<compile_context>
chip_gen: v7x
topology: tpu7x:2x2x1
jax: 0.10.0
libtpu: 0.0.40
codegen_flags: <defaults>
</compile_context>

<pallas_src>
import functools

import jax
import jax.numpy as jnp
from jax import lax
from jax.experimental import pallas as pl
from jax.experimental.pallas import tpu as pltpu


def _round_up(x, m):
    return ((x + m - 1) // m) * m


def _pow_chunk(xc, p, eps):
    """clamp(min=eps) then x**p on one chunk, in f32, integer-pow specialized."""
    xc = jnp.maximum(xc.astype(jnp.float32), jnp.float32(eps))
    if float(p).is_integer():
        return lax.integer_pow(xc, int(p))   # x*x*x for p=3: VPU only, no EUP log/exp
    return xc ** jnp.float32(p)              # fallback for non-integer p


def _gem1d_kernel(x_ref, o_ref, acc_ref, *, p, eps, length, tile_l, lane_w,
                  n_l, mask_last):
    """Streams one (tile_r, tile_l) block of the flattened (R, L) input.

    grid = (row_blocks, l_blocks); the reduction axis (L) is last.
    acc_ref : (tile_r, lane_w) f32 lane-wise partial sums, resident across L.
    o_ref   : (1, 1, tile_r) lane-dense output block, written on the last L step.
    """
    l = pl.program_id(1)
    n_chunks = tile_l // lane_w
    rem = length - (n_l - 1) * tile_l        # valid lanes in the last L block (static)

    @pl.when(l == 0)
    def _init():
        acc_ref[...] = jnp.zeros_like(acc_ref)

    def fold(masked):
        # Fused, register-resident chunk loop: slice the input ref one lane_w-wide
        # chunk at a time, clamp/pow it and accumulate into a vreg-resident partial.
        # The accumulator scratch is touched exactly once per tile (below).
        part = None
        for c in range(n_chunks):
            start = c * lane_w
            end = start + lane_w
            if masked and start >= rem:
                break                        # fully-OOB chunks: skip load and compute
            xp = _pow_chunk(x_ref[:, start:end], p, eps)
            if masked and end > rem:
                # Only the single straddling chunk pays for iota/cmp/select.
                lane = lax.broadcasted_iota(jnp.int32, xp.shape, 1)
                xp = jnp.where(lane < (rem - start), xp, 0.0)
            part = xp if part is None else part + xp
        return part

    if not mask_last:
        acc_ref[...] += fold(False)
    elif n_l == 1:
        acc_ref[...] += fold(True)
    else:
        @pl.when(l < n_l - 1)
        def _interior():                     # unmasked hot path for interior tiles
            acc_ref[...] += fold(False)

        @pl.when(l == n_l - 1)
        def _last_tile():                    # masked path only on the last L tile
            acc_ref[...] += fold(True)

    @pl.when(l == n_l - 1)
    def _finalize():
        # One cross-lane (XLU) reduce + mean + 1/p root per row block.
        total = jnp.sum(acc_ref[...], axis=-1)            # (tile_r,)
        mean = total * jnp.float32(1.0 / length)
        root = mean ** jnp.float32(1.0 / p)
        o_ref[...] = root.reshape(o_ref.shape).astype(o_ref.dtype)


def gem1d(x, p=3.0, eps=1e-6, *, max_tile_l=8192):
    """GeM pooling over the last axis. x: (N, C, L) -> (N, C, 1)."""
    N, C, L = x.shape
    R = N * C
    x2 = x.reshape(R, L)   # contiguous reshape only; no jnp.pad / extra HBM pass

    # Lane (L) tiling: multiples of 128 lanes, up to 4 MiB f32 input tiles.
    # For L < 128 use the full (unblocked) dim so no tail masking is needed.
    if L < 128:
        tile_l, lane_w = L, L
    else:
        tile_l, lane_w = min(max_tile_l, _round_up(L, 128)), 128

    # Row tiling: multiple-of-8 sublanes, capped at 128 so the fused chunk loop stays
    # register-resident; aim for >= 2 row blocks so the "parallel" axis can shard
    # across both TensorCores on v7x.
    if R < 8:
        tile_r = R                                   # full (unblocked) row dim
    elif R < 256:
        tile_r = _round_up(-(-R // 2), 8)            # ceil(R/2) rounded to 8 (<= R)
    else:
        tile_r = 128

    n_r = pl.cdiv(R, tile_r)
    n_l = pl.cdiv(L, tile_l)
    mask_last = (L % tile_l) != 0

    kernel = functools.partial(
        _gem1d_kernel, p=float(p), eps=float(eps), length=L,
        tile_l=tile_l, lane_w=lane_w, n_l=n_l, mask_last=mask_last)

    out = pl.pallas_call(
        kernel,
        out_shape=jax.ShapeDtypeStruct((n_r, 1, tile_r), x.dtype),
        grid_spec=pltpu.PrefetchScalarGridSpec(
            num_scalar_prefetch=0,
            grid=(n_r, n_l),                                 # reduction axis (L) last
            in_specs=[pl.BlockSpec((tile_r, tile_l), lambda r, l: (r, l))],
            out_specs=pl.BlockSpec((1, 1, tile_r), lambda r, l: (r, 0, 0)),
            scratch_shapes=[pltpu.VMEM((tile_r, lane_w), jnp.float32)],
        ),
        compiler_params=pltpu.CompilerParams(
            # rows independent -> "parallel" (sharded across TCs on v7x megacore);
            # L carries the resident accumulator -> "arbitrary".
            dimension_semantics=("parallel", "arbitrary"),
            # ~8 MiB double-buffered input + tiny scratch; explicit limit covers
            # v5e's 16 MiB scoped default and stays under v7x's 64 MiB physical.
            vmem_limit_bytes=32 * 1024 * 1024),
    )(x2)

    # Lane-dense (n_r, 1, tile_r) -> flat rows; drop garbage edge rows, restore (N, C, 1).
    return out.reshape(n_r * tile_r)[:R].reshape(N, C, 1)


class GeM1d:
    """JAX/Pallas port of the PyTorch GeM1d module (freeze_p=True path)."""

    def __init__(self, p=3.0, eps=1e-6, freeze_p=True):
        # TODO(synk): freeze_p=False (learnable p) would need p as an SMEM scalar
        # input and a non-specialized pow path inside the kernel; p stays static.
        self.p = float(p)
        self.eps = float(eps)

    def __call__(self, x):
        return gem1d(x, p=self.p, eps=self.eps)


if __name__ == "__main__":
    key = jax.random.PRNGKey(0)
    k0, k1, k2 = jax.random.split(key, 3)

    def ref_gem1d(x, p=3.0, eps=1e-6):
        return jnp.mean(jnp.maximum(x, eps) ** p, axis=-1, keepdims=True) ** (1.0 / p)

    mod = GeM1d(p=3.0, eps=1e-6, freeze_p=True)

    # (batch, channels, length) — matches F.avg_pool1d input layout.
    x0 = jax.random.normal(k0, (2, 4, 16), dtype=jnp.float32)
    o0 = jax.block_until_ready(mod(x0))
    assert o0.shape == (2, 4, 1)
    assert jnp.allclose(o0, ref_gem1d(x0), atol=1e-5, rtol=1e-4)

    # Uneven rows (R=6, full-dim row block) and an L tail straddling a 128-lane chunk.
    x1 = jax.random.normal(k1, (2, 3, 200), dtype=jnp.float32)
    o1 = jax.block_until_ready(mod(x1))
    assert o1.shape == (2, 3, 1)
    assert jnp.allclose(o1, ref_gem1d(x1), atol=1e-5, rtol=1e-4)

    # Multi-L-block path: interior unmasked tiles + masked last tile + skipped OOB
    # chunk + partial row edge block. Small data; small tile_l forced for coverage.
    x2 = jax.random.normal(k2, (3, 5, 600), dtype=jnp.float32)
    o2 = jax.block_until_ready(gem1d(x2, p=3.0, eps=1e-6, max_tile_l=256))
    assert o2.shape == (3, 5, 1)
    assert jnp.allclose(o2, ref_gem1d(x2), atol=1e-5, rtol=1e-4)

    print("KERNEL_OK")
</pallas_src>

<mosaic_0001>
module attributes {stable_mosaic.version = 11 : i64} {
  func.func @_gem1d_kernel(%arg0: i32, %arg1: i32, %arg2: memref<8x16xf32, #tpu.memory_space<vmem>>, %arg3: memref<1x1x8xf32, #tpu.memory_space<vmem>>, %arg4: memref<8x16xf32, #tpu.memory_space<vmem>>) attributes {dimension_semantics = [#tpu.dimension_semantics<parallel>, #tpu.dimension_semantics<arbitrary>], iteration_bounds = array<i64: 1, 1>, scalar_prefetch = 0 : i64, scratch_operands = 1 : i64, tpu.core_type = #tpu.core_type<tc>, window_params = [{transform_indices = @transform_0, window_bounds = array<i64: 8, 16>}, {transform_indices = @transform_1, window_bounds = array<i64: 1, 1, 8>}]} {
    %c0_i32 = arith.constant 0 : i32
    %0 = arith.cmpi eq, %arg1, %c0_i32 : i32
    %1 = arith.extui %0 : i1 to i32
    %c0_i32_0 = arith.constant 0 : i32
    %2 = arith.cmpi ne, %1, %c0_i32_0 : i32
    scf.if %2 {
      %cst_8 = arith.constant 0.000000e+00 : f32
      %14 = vector.broadcast %cst_8 : f32 to vector<8x16xf32>
      %c0_9 = arith.constant 0 : index
      %c0_10 = arith.constant 0 : index
      %15 = vector.load %arg4[%c0_9, %c0_10] : memref<8x16xf32, #tpu.memory_space<vmem>>, vector<8x16xf32>
      tpu.vector_store %arg4[%c0_9, %c0_10], %14 {strides = array<i32>} : memref<8x16xf32, #tpu.memory_space<vmem>>, vector<8x16xf32>,
    } else {
    }
    %c0 = arith.constant 0 : index
    %c0_1 = arith.constant 0 : index
    %3 = vector.load %arg4[%c0, %c0_1] : memref<8x16xf32, #tpu.memory_space<vmem>>, vector<8x16xf32>
    %c0_2 = arith.constant 0 : index
    %c0_3 = arith.constant 0 : index
    %4 = vector.load %arg2[%c0_2, %c0_3] : memref<8x16xf32, #tpu.memory_space<vmem>>, vector<8x16xf32>
    %cst = arith.constant 9.99999997E-7 : f32
    %5 = vector.broadcast %cst : f32 to vector<8x16xf32>
    %6 = arith.maximumf %4, %5 : vector<8x16xf32>
    %7 = arith.mulf %6, %6 : vector<8x16xf32>
    %8 = arith.mulf %6, %7 : vector<8x16xf32>
    %9 = arith.addf %3, %8 : vector<8x16xf32>
    %c0_4 = arith.constant 0 : index
    %c0_5 = arith.constant 0 : index
    %10 = vector.load %arg4[%c0_4, %c0_5] : memref<8x16xf32, #tpu.memory_space<vmem>>, vector<8x16xf32>
    tpu.vector_store %arg4[%c0_4, %c0_5], %9 {strides = array<i32>} : memref<8x16xf32, #tpu.memory_space<vmem>>, vector<8x16xf32>,
    %c0_i32_6 = arith.constant 0 : i32
    %11 = arith.cmpi eq, %arg1, %c0_i32_6 : i32
    %12 = arith.extui %11 : i1 to i32
    %c0_i32_7 = arith.constant 0 : i32
    %13 = arith.cmpi ne, %12, %c0_i32_7 : i32
    scf.if %13 {
      %c0_8 = arith.constant 0 : index
      %c0_9 = arith.constant 0 : index
      %14 = vector.load %arg4[%c0_8, %c0_9] : memref<8x16xf32, #tpu.memory_space<vmem>>, vector<8x16xf32>
      %cst_10 = arith.constant dense<0.000000e+00> : vector<8xf32>
      %15 = vector.multi_reduction <add>, %14, %cst_10 [1] : vector<8x16xf32> to vector<8xf32>
      %cst_11 = arith.constant 6.250000e-02 : f32
      %16 = vector.broadcast %cst_11 : f32 to vector<8xf32>
      %17 = arith.mulf %15, %16 : vector<8xf32>
      %cst_12 = arith.constant 0.333333343 : f32
      %18 = vector.broadcast %cst_12 : f32 to vector<8xf32>
      %19 = math.powf %17, %18 : vector<8xf32>
      %20 = vector.shape_cast %19 : vector<8xf32> to vector<1x1x8xf32>
      %c0_13 = arith.constant 0 : index
      %c0_14 = arith.constant 0 : index
      %c0_15 = arith.constant 0 : index
      %21 = vector.load %arg3[%c0_13, %c0_14, %c0_15] : memref<1x1x8xf32, #tpu.memory_space<vmem>>, vector<1x1x8xf32>
      tpu.vector_store %arg3[%c0_13, %c0_14, %c0_15], %20 {strides = array<i32>} : memref<1x1x8xf32, #tpu.memory_space<vmem>>, vector<1x1x8xf32>,
    } else {
    }
    return
  }
  func.func @transform_0(%arg0: i32, %arg1: i32) -> (i32, i32) {
    %c0_i32 = arith.constant 0 : i32
    return %arg0, %arg1 : i32, i32
  }
  func.func @transform_1(%arg0: i32, %arg1: i32) -> (i32, i32, i32) {
    %c0_i32 = arith.constant 0 : i32
    %c0_i32_0 = arith.constant 0 : i32
    %c0_i32_1 = arith.constant 0 : i32
    return %arg0, %c0_i32, %c0_i32_0 : i32, i32, i32
  }
}

</mosaic_0001>

<llo_original>
// kernel: tpu_custom_call.1
$region0: #{tpu_custom_call.1}
  #allocation0 [shape = 'u32[]', space=smem, size = 0x4, offset = 0x4, fixed_abs, tag = 'smem constant byte address 0x4 - core index']
  #allocation1 [shape = 'u32[144,128]{1,0:T(1,128)}', space=vmem, size = 0x12000, scoped, tag = 'internal scratch']
  #allocation2 [shape = 'f32[8,16]{1,0:T(8,128)}', space=vmem, size = 0x1000, scoped, tag = 'scratch operand']
  %s0 = inlined_call_operand.hbm [shape: f32[8,16], index: 0, kind: input, shape index: {}]
  %s1 = inlined_call_operand.hbm [shape: f32[1,1,8], index: 1, kind: output, shape index: {}]
  %s2 = sld [smem:[#allocation0]]
  $region26: #{tpu_custom_call.1} parent=0
    _
  %s4 = ssub.s32 1, %s2
  %s5 = scalar_select 0, %s4, %s2
  $region1: #{tpu_custom_call.1} parent=0
    #allocation3 [shape = 'u8[4096]{0}', space=vmem, size = 0x1000, scoped, tag = 'input window, operand 0, single buffered']
    #allocation4 [shape = 's32[1]{0}', space=sflag, size = 0x4, scoped, tag = 'scoped memory for tpu_custom_call.1']
    #allocation5 [shape = 's32[1]{0}', space=sflag, size = 0x4, scoped, tag = 'scoped memory for tpu_custom_call.1']
    #allocation6 [shape = 'u8[512]{0}', space=vmem, size = 0x400, scoped, tag = 'output window, operand 0, single buffered']
    %6 = vsyncpa [#allocation4], 0
    %7 = vsyncpa [#allocation5], 0
    // Predicated region
    $region2: #{tpu_custom_call.1} parent=1 // pred_check
      _
    $region3: #{tpu_custom_call.1} parent=1 // pred_check_branch
      %9 = sbr.rel (0) target = $region5
    $region4: #{tpu_custom_call.1} parent=1 // pred_region
      %s11 = ssub.s32 128, 128
      %12 = vsyncadd [#allocation4], %s11
      %s14 = sshll.u32 [#allocation3], 4
      %s15 = int_to_ptr.vmem [resolvable:$true] %s14
      %17 = dma.hbm_to_vmem [thread:$0]  %s0, 128, %s15, [#allocation4]
    $region5: #{tpu_custom_call.1} parent=1 // pred_fallthru
      _
    // Predicated region
    $region6: #{tpu_custom_call.1} parent=1 // pred_check
      _
    $region7: #{tpu_custom_call.1} parent=1 // pred_check_branch
      %19 = sbr.rel (0) target = $region9
    $region8: #{tpu_custom_call.1} parent=1 // pred_region
      %20 = dma.done [#allocation4], 128
    $region9: #{tpu_custom_call.1} parent=1 // pred_fallthru
      _
    %p21 = scmp.eq.s32.totalorder 0, 0
    // Predicated region
    $region10: #{tpu_custom_call.1} parent=1 // pred_check
      %p22 = pneg %p21
    $region11: #{tpu_custom_call.1} parent=1 // pred_check_branch
      %24 = sbr.rel (%p22) target = $region13
    $region12: #{tpu_custom_call.1} parent=1 // pred_region
      %vm25 = vcmask 130048
      %26 = vst.msk [vmem:[#allocation2] sm:$0xff] %vm25, 0.0
    $region13: #{tpu_custom_call.1} parent=1 // pred_fallthru
      _
    %v27 = vld [vmem:[#allocation2] sm:$0xff]
    %v28 = vld [vmem:[#allocation3] sm:$0xff]
    %v29 = vmax.f32 %v28, 1e-06
    %v30 = vmul.f32 %v29, %v29
    %v31 = vmul.f32 %v29, %v30
    %v32 = vadd.f32 %v27, %v31
    %vm33 = vcmask 130048
    %34 = vst.msk [vmem:[#allocation2] sm:$0xff] %vm33, %v32
    // Predicated region
    $region14: #{tpu_custom_call.1} parent=1 // pred_check
      %p35 = pneg %p21
    $region15: #{tpu_custom_call.1} parent=1 // pred_check_branch
      %37 = sbr.rel (%p35) target = $region17
    $region16: #{tpu_custom_call.1} parent=1 // pred_region
      %v38 = vld [vmem:[#allocation2] sm:$0xff]
      %v39 = vsel %vm33, %v38, 0.0
      %40 = vadd.xlane.f32.xlu0 %v39
      %v41 = vpop.xlane.xlu0 %40
      %v42 = vmul.f32 %v41, 0.0625
      %v43 = vpow.f32 %v42, 0.33333334
      %v45 = vlaneseq
      %v46 = vand.u32 %v45, 127
      %v47 = vlaneseq
      %v48 = vshrl.u32 %v47, 7
      %v49 = vsub.s32 %v46, %v48
      %v50 = vrot.slane %v43, %v49
      %vm52 = vcmask 57344
      %53 = vst.msk [vmem:[#allocation6] sm:$0x1] %vm52, %v50
    $region17: #{tpu_custom_call.1} parent=1 // pred_fallthru
      _
    // Predicated region
    $region18: #{tpu_custom_call.1} parent=1 // pred_check
      _
    $region19: #{tpu_custom_call.1} parent=1 // pred_check_branch
      %55 = sbr.rel (0) target = $region21
    $region20: #{tpu_custom_call.1} parent=1 // pred_region
      %s57 = ssub.s32 16, 16
      %58 = vsyncadd [#allocation5], %s57
      %s60 = sshll.u32 [#allocation6], 4
      %s61 = int_to_ptr.vmem [resolvable:$true] %s60
      %63 = dma.vmem_to_hbm [thread:$0]  %s61, 16, %s1, [#allocation5]
    $region21: #{tpu_custom_call.1} parent=1 // pred_fallthru
      _
    // Predicated region
    $region22: #{tpu_custom_call.1} parent=1 // pred_check
      _
    $region23: #{tpu_custom_call.1} parent=1 // pred_check_branch
      %65 = sbr.rel (0) target = $region25
    $region24: #{tpu_custom_call.1} parent=1 // pred_region
      %66 = dma.done [#allocation5], 16
    $region25: #{tpu_custom_call.1} parent=1 // pred_fallthru
      _
    %67 = vsyncpa [#allocation4], 1
    %68 = vsyncpa [#allocation5], 1

</llo_original>
